<compile_context>
chip_gen: v7x
topology: tpu7x:2x2x1
jax: 0.10.0
libtpu: 0.0.40
codegen_flags: <defaults>
</compile_context>

<pallas_src>
import jax
import jax.numpy as jnp
from jax.experimental import pallas as pl
from jax.experimental.pallas import tpu as pltpu


def _round_up(x, m):
    return ((x + m - 1) // m) * m


def _choose_batch_tile(B, batch_tile):
    """Pick the batch tile TB.

    Rules (from the perf review):
      * cap at batch_tile (default 1024; sweep 512-2048, bias 2048 on v7x),
      * cap at ceil(B/2) (rounded to 8) when B >= 16 so the grid has >= 2
        steps and both v7x TensorCores are busy,
      * prefer a TB that divides B exactly (avoids the jnp.pad copy of x),
        but never shrink below cap//4 just to get divisibility.
    """
    cap = min(batch_tile, _round_up(B, 8))
    if B >= 16:
        cap = min(cap, max(8, _round_up((B + 1) // 2, 8)))
    cap = max(8, cap - cap % 8)
    if B % 8 == 0:
        tb = cap
        floor = max(8, cap // 4)
        while tb >= floor:
            if B % tb == 0:
                return tb
            tb -= 8
    return cap


# ----------------------------- Pallas kernel --------------------------------
def vqvae_kernel(
    x_ref,
    w1_ref, b1_ref, w2_ref, b2_ref, wz_ref, bz_ref,      # encoder params
    emb_ref, e2_ref,                                      # codebook + ||e||^2
    wd1_ref, bd1_ref, wd2_ref, bd2_ref, wo_ref, bo_ref,   # decoder params
    out_ref,                                              # packed output slab
):
    f32 = jnp.float32
    x = x_ref[...]

    # ---------------- encoder MLP (MXU matmuls + VPU relu) -------------------
    h = jnp.maximum(
        jnp.dot(x, w1_ref[...], preferred_element_type=f32) + b1_ref[...], 0.0)
    h = jnp.maximum(
        jnp.dot(h, w2_ref[...], preferred_element_type=f32) + b2_ref[...], 0.0)
    z_e = jnp.dot(h, wz_ref[...], preferred_element_type=f32) + bz_ref[...]

    # ---------------- nearest-embedding quantization --------------------------
    emb = emb_ref[...]                                    # (embed_dim, num_embed)
    num_embed = emb.shape[1]
    # squared L2 distance via expansion: ||z||^2 - 2 z.e + ||e||^2
    z2 = jnp.sum(z_e * z_e, axis=-1, keepdims=True)       # (TB, 1)
    cross = jnp.dot(z_e, emb, preferred_element_type=f32)  # (TB, num_embed)
    dist = z2 - 2.0 * cross + e2_ref[...]                 # (TB, num_embed)

    # first-argmin (matches torch.min tie-breaking) without a gather
    min_d = jnp.min(dist, axis=-1, keepdims=True)
    lane_iota = jax.lax.broadcasted_iota(jnp.int32, dist.shape, 1)
    idx = jnp.min(
        jnp.where(dist <= min_d, lane_iota, num_embed), axis=-1, keepdims=True)
    onehot = (lane_iota == idx).astype(f32)               # (TB, num_embed)

    # z_q[b, d] = sum_k onehot[b, k] * emb[d, k]   (gather via one-hot matmul)
    z_q = jax.lax.dot_general(
        onehot, emb, (((1,), (1,)), ((), ())), preferred_element_type=f32)

    # ---------------- decoder MLP ---------------------------------------------
    d = jnp.maximum(
        jnp.dot(z_q, wd1_ref[...], preferred_element_type=f32) + bd1_ref[...], 0.0)
    d = jnp.maximum(
        jnp.dot(d, wd2_ref[...], preferred_element_type=f32) + bd2_ref[...], 0.0)
    recon = jax.nn.sigmoid(
        jnp.dot(d, wo_ref[...], preferred_element_type=f32) + bo_ref[...])

    # -------- single lane-dense writeback: [recon | z_e | z_q | zero pad] -----
    tb = x.shape[0]
    pad = out_ref.shape[1] - (recon.shape[1] + 2 * z_e.shape[1])
    pieces = [recon, z_e, z_q]
    if pad:
        pieces.append(jnp.zeros((tb, pad), f32))
    out_ref[...] = jnp.concatenate(pieces, axis=-1)


# ------------------------------- wrapper -------------------------------------
def vqvae_forward(x, params, *, batch_tile=1024):
    """x: (B, in_dim) float32. params: dict of transposed (in, out) f32 weights.

    Returns (recon_x, z_e, emb_q), each (B, .) float32.

    batch_tile guidance (perf review):
      default 1024, sweep 512-2048.
      v7x: bias toward 2048 (3.2 TB/s HBM makes per-step overhead relatively
           costlier) once the grid still has >= 2 steps for its 2 TensorCores.
      v6e: 1024-2048 (128 MiB VMEM).
      v5e: 1024 is fine under the 16 MiB scoped-VMEM default; set
           vmem_limit_bytes explicitly only if pushing well past ~2048.
    Per-tile activation footprint at TB=2048 is <3 MiB double-buffered.
    """
    B, in_dim = x.shape
    z_dim = params["wz"].shape[1]
    num_embed = params["emb"].shape[1]
    h1 = params["w1"].shape[1]
    h2 = params["w2"].shape[1]
    d1 = params["wd1"].shape[1]
    d2 = params["wd2"].shape[1]

    # lane-dense packed output width: [recon(in_dim) | z_e | z_q] padded to 128
    PACK = _round_up(in_dim + 2 * z_dim, 128)

    TB = _choose_batch_tile(B, batch_tile)
    Bp = _round_up(B, TB)
    # only pad when TB does not divide B (padding re-reads/writes all of x)
    x_p = x if Bp == B else jnp.pad(x, ((0, Bp - B), (0, 0)))

    # ||e||^2 precomputed once in the wrapper (no per-step cross-sublane reduce)
    e2 = jnp.sum(params["emb"] * params["emb"], axis=0, keepdims=True)

    # all parameters stay f32: paid once as a ~27 KiB resident DMA, no
    # per-step upcast work, numerics identical to the PyTorch module.
    args = (
        x_p,
        params["w1"], params["b1"], params["w2"], params["b2"],
        params["wz"], params["bz"],
        params["emb"], e2,
        params["wd1"], params["bd1"], params["wd2"], params["bd2"],
        params["wo"], params["bo"],
    )

    def tiled(shape):
        return pl.BlockSpec(shape, lambda i: (i, 0))

    def resident(a):  # DMA'd once, stays in VMEM across all grid steps
        return pl.BlockSpec(a.shape, lambda i: (0, 0))

    in_specs = [tiled((TB, in_dim))] + [resident(a) for a in args[1:]]
    out_specs = tiled((TB, PACK))
    out_shape = jax.ShapeDtypeStruct((Bp, PACK), jnp.float32)

    flops = 2 * Bp * (in_dim * h1 + h1 * h2 + h2 * z_dim
                      + 2 * z_dim * num_embed
                      + z_dim * d1 + d1 * d2 + d2 * in_dim)
    bytes_accessed = (sum(int(a.size) * a.dtype.itemsize for a in args)
                      + Bp * PACK * 4)
    cost = pl.CostEstimate(flops=flops, transcendentals=Bp * in_dim,
                           bytes_accessed=bytes_accessed)

    packed = pl.pallas_call(
        vqvae_kernel,
        out_shape=out_shape,
        grid=(Bp // TB,),
        in_specs=in_specs,
        out_specs=out_specs,
        compiler_params=pltpu.CompilerParams(
            dimension_semantics=("parallel",)),
        cost_estimate=cost,
    )(*args)

    recon_x = packed[:B, :in_dim]
    z_e = packed[:B, in_dim:in_dim + z_dim]
    emb_q = packed[:B, in_dim + z_dim:in_dim + 2 * z_dim]
    return recon_x, z_e, emb_q


# ------------------------- deterministic parameter init ----------------------
def init_params(key, in_dim, enc_hid, dec_hid, z_dim, embed_dim, num_embed):
    """Mimic PyTorch defaults: Linear ~ U(-1/sqrt(fan_in), +), codebook ~ U(0,1).
    Weights are stored transposed as (in, out) so the kernel computes x @ W."""
    keys = jax.random.split(key, 16)
    ki = iter(keys)

    def linear(kw, kb, fan_in, fan_out):
        bound = 1.0 / jnp.sqrt(fan_in)
        w = jax.random.uniform(kw, (fan_in, fan_out), jnp.float32, -bound, bound)
        b = jax.random.uniform(kb, (1, fan_out), jnp.float32, -bound, bound)
        return w, b

    p = {}
    p["w1"], p["b1"] = linear(next(ki), next(ki), in_dim, enc_hid[0])
    p["w2"], p["b2"] = linear(next(ki), next(ki), enc_hid[0], enc_hid[1])
    p["wz"], p["bz"] = linear(next(ki), next(ki), enc_hid[1], z_dim)
    p["emb"] = jax.random.uniform(next(ki), (embed_dim, num_embed), jnp.float32)
    p["wd1"], p["bd1"] = linear(next(ki), next(ki), z_dim, dec_hid[0])
    p["wd2"], p["bd2"] = linear(next(ki), next(ki), dec_hid[0], dec_hid[1])
    p["wo"], p["bo"] = linear(next(ki), next(ki), dec_hid[1], in_dim)
    return p


# ------------------------- plain-JAX reference (sanity) ----------------------
def vqvae_ref(x, p):
    """Pure-JAX f32 reference mirroring the PyTorch forward exactly."""
    h = jax.nn.relu(x @ p["w1"] + p["b1"])
    h = jax.nn.relu(h @ p["w2"] + p["b2"])
    z_e = h @ p["wz"] + p["bz"]
    emb = p["emb"]
    diff = z_e[:, :, None] - emb[None, :, :]
    dist = jnp.sqrt(jnp.sum(diff * diff, axis=1))
    idx = jnp.argmin(dist, axis=-1)
    z_q = emb.T[idx]
    d = jax.nn.relu(z_q @ p["wd1"] + p["bd1"])
    d = jax.nn.relu(d @ p["wd2"] + p["bd2"])
    recon = jax.nn.sigmoid(d @ p["wo"] + p["bo"])
    return recon, z_e, z_q


if __name__ == "__main__":
    # Small shapes consistent with the module:
    #   in_dim=64, encoder_hid=[32,32], z_dim=embed_dim=8, num_embed=16, B=8
    B, in_dim, z_dim = 8, 64, 8
    embed_dim, num_embed = z_dim, 16
    enc_hid, dec_hid = [32, 32], [32, 32]

    key = jax.random.PRNGKey(0)
    kx, kp = jax.random.split(key)
    x = jax.random.uniform(kx, (B, in_dim), jnp.float32)   # "image-like" inputs
    params = init_params(kp, in_dim, enc_hid, dec_hid, z_dim, embed_dim, num_embed)

    recon_x, z_e, emb_q = jax.block_until_ready(vqvae_forward(x, params))

    # sanity check against pure-JAX f32 reference
    r_ref, z_ref, e_ref = vqvae_ref(x, params)
    assert jnp.allclose(recon_x, r_ref, atol=1e-4, rtol=1e-4), "recon mismatch"
    assert jnp.allclose(z_e, z_ref, atol=1e-4, rtol=1e-4), "z_e mismatch"
    assert jnp.allclose(emb_q, e_ref, atol=1e-4, rtol=1e-4), "emb mismatch"

    print("KERNEL_OK")
</pallas_src>

<mosaic_0001>
module attributes {stable_mosaic.version = 11 : i64} {
  func.func @vqvae_kernel(%arg0: i32, %arg1: memref<8x64xf32, #tpu.memory_space<vmem>>, %arg2: memref<64x32xf32, #tpu.memory_space<vmem>>, %arg3: memref<1x32xf32, #tpu.memory_space<vmem>>, %arg4: memref<32x32xf32, #tpu.memory_space<vmem>>, %arg5: memref<1x32xf32, #tpu.memory_space<vmem>>, %arg6: memref<32x8xf32, #tpu.memory_space<vmem>>, %arg7: memref<1x8xf32, #tpu.memory_space<vmem>>, %arg8: memref<8x16xf32, #tpu.memory_space<vmem>>, %arg9: memref<1x16xf32, #tpu.memory_space<vmem>>, %arg10: memref<8x32xf32, #tpu.memory_space<vmem>>, %arg11: memref<1x32xf32, #tpu.memory_space<vmem>>, %arg12: memref<32x32xf32, #tpu.memory_space<vmem>>, %arg13: memref<1x32xf32, #tpu.memory_space<vmem>>, %arg14: memref<32x64xf32, #tpu.memory_space<vmem>>, %arg15: memref<1x64xf32, #tpu.memory_space<vmem>>, %arg16: memref<8x128xf32, #tpu.memory_space<vmem>>) attributes {dimension_semantics = [#tpu.dimension_semantics<parallel>], iteration_bounds = array<i64: 1>, scalar_prefetch = 0 : i64, scratch_operands = 0 : i64, tpu.core_type = #tpu.core_type<tc>, window_params = [{transform_indices = @transform_0, window_bounds = array<i64: 8, 64>}, {pipeline_mode = #tpu.pipeline_mode<synchronous>, transform_indices = @transform_1, window_bounds = array<i64: 64, 32>}, {pipeline_mode = #tpu.pipeline_mode<synchronous>, transform_indices = @transform_2, window_bounds = array<i64: 1, 32>}, {pipeline_mode = #tpu.pipeline_mode<synchronous>, transform_indices = @transform_3, window_bounds = array<i64: 32, 32>}, {pipeline_mode = #tpu.pipeline_mode<synchronous>, transform_indices = @transform_4, window_bounds = array<i64: 1, 32>}, {pipeline_mode = #tpu.pipeline_mode<synchronous>, transform_indices = @transform_5, window_bounds = array<i64: 32, 8>}, {pipeline_mode = #tpu.pipeline_mode<synchronous>, transform_indices = @transform_6, window_bounds = array<i64: 1, 8>}, {pipeline_mode = #tpu.pipeline_mode<synchronous>, transform_indices = @transform_7, window_bounds = array<i64: 8, 16>}, {pipeline_mode = #tpu.pipeline_mode<synchronous>, transform_indices = @transform_8, window_bounds = array<i64: 1, 16>}, {pipeline_mode = #tpu.pipeline_mode<synchronous>, transform_indices = @transform_9, window_bounds = array<i64: 8, 32>}, {pipeline_mode = #tpu.pipeline_mode<synchronous>, transform_indices = @transform_10, window_bounds = array<i64: 1, 32>}, {pipeline_mode = #tpu.pipeline_mode<synchronous>, transform_indices = @transform_11, window_bounds = array<i64: 32, 32>}, {pipeline_mode = #tpu.pipeline_mode<synchronous>, transform_indices = @transform_12, window_bounds = array<i64: 1, 32>}, {pipeline_mode = #tpu.pipeline_mode<synchronous>, transform_indices = @transform_13, window_bounds = array<i64: 32, 64>}, {pipeline_mode = #tpu.pipeline_mode<synchronous>, transform_indices = @transform_14, window_bounds = array<i64: 1, 64>}, {transform_indices = @transform_15, window_bounds = array<i64: 8, 128>}]} {
    %c0 = arith.constant 0 : index
    %c0_0 = arith.constant 0 : index
    %0 = vector.load %arg1[%c0, %c0_0] : memref<8x64xf32, #tpu.memory_space<vmem>>, vector<8x64xf32>
    %c0_1 = arith.constant 0 : index
    %c0_2 = arith.constant 0 : index
    %1 = vector.load %arg2[%c0_1, %c0_2] : memref<64x32xf32, #tpu.memory_space<vmem>>, vector<64x32xf32>
    %cst = arith.constant dense<0.000000e+00> : vector<8x32xf32>
    %2 = tpu.matmul %0, %1, %cst {dimension_numbers = #tpu.dot_dimension_numbers<[1], [0], [0], [1], [0, 0, 1, 1], [], []>} : vector<8x64xf32>, vector<64x32xf32>, vector<8x32xf32> -> vector<8x32xf32>
    %c0_3 = arith.constant 0 : index
    %c0_4 = arith.constant 0 : index
    %3 = vector.load %arg3[%c0_3, %c0_4] : memref<1x32xf32, #tpu.memory_space<vmem>>, vector<1x32xf32>
    %4 = vector.broadcast %3 : vector<1x32xf32> to vector<8x32xf32>
    %5 = arith.addf %2, %4 : vector<8x32xf32>
    %cst_5 = arith.constant 0.000000e+00 : f32
    %6 = vector.broadcast %cst_5 : f32 to vector<8x32xf32>
    %7 = arith.maximumf %5, %6 : vector<8x32xf32>
    %c0_6 = arith.constant 0 : index
    %c0_7 = arith.constant 0 : index
    %8 = vector.load %arg4[%c0_6, %c0_7] : memref<32x32xf32, #tpu.memory_space<vmem>>, vector<32x32xf32>
    %cst_8 = arith.constant dense<0.000000e+00> : vector<8x32xf32>
    %9 = tpu.matmul %7, %8, %cst_8 {dimension_numbers = #tpu.dot_dimension_numbers<[1], [0], [0], [1], [0, 0, 1, 1], [], []>} : vector<8x32xf32>, vector<32x32xf32>, vector<8x32xf32> -> vector<8x32xf32>
    %c0_9 = arith.constant 0 : index
    %c0_10 = arith.constant 0 : index
    %10 = vector.load %arg5[%c0_9, %c0_10] : memref<1x32xf32, #tpu.memory_space<vmem>>, vector<1x32xf32>
    %11 = vector.broadcast %10 : vector<1x32xf32> to vector<8x32xf32>
    %12 = arith.addf %9, %11 : vector<8x32xf32>
    %cst_11 = arith.constant 0.000000e+00 : f32
    %13 = vector.broadcast %cst_11 : f32 to vector<8x32xf32>
    %14 = arith.maximumf %12, %13 : vector<8x32xf32>
    %c0_12 = arith.constant 0 : index
    %c0_13 = arith.constant 0 : index
    %15 = vector.load %arg6[%c0_12, %c0_13] : memref<32x8xf32, #tpu.memory_space<vmem>>, vector<32x8xf32>
    %cst_14 = arith.constant dense<0.000000e+00> : vector<8x8xf32>
    %16 = tpu.matmul %14, %15, %cst_14 {dimension_numbers = #tpu.dot_dimension_numbers<[1], [0], [0], [1], [0, 0, 1, 1], [], []>} : vector<8x32xf32>, vector<32x8xf32>, vector<8x8xf32> -> vector<8x8xf32>
    %c0_15 = arith.constant 0 : index
    %c0_16 = arith.constant 0 : index
    %17 = vector.load %arg7[%c0_15, %c0_16] : memref<1x8xf32, #tpu.memory_space<vmem>>, vector<1x8xf32>
    %18 = vector.broadcast %17 : vector<1x8xf32> to vector<8x8xf32>
    %19 = arith.addf %16, %18 : vector<8x8xf32>
    %c0_17 = arith.constant 0 : index
    %c0_18 = arith.constant 0 : index
    %20 = vector.load %arg8[%c0_17, %c0_18] : memref<8x16xf32, #tpu.memory_space<vmem>>, vector<8x16xf32>
    %21 = arith.mulf %19, %19 : vector<8x8xf32>
    %cst_19 = arith.constant dense<0.000000e+00> : vector<8xf32>
    %22 = vector.multi_reduction <add>, %21, %cst_19 [1] : vector<8x8xf32> to vector<8xf32>
    %23 = vector.shape_cast %22 : vector<8xf32> to vector<8x1xf32>
    %cst_20 = arith.constant dense<0.000000e+00> : vector<8x16xf32>
    %24 = tpu.matmul %19, %20, %cst_20 {dimension_numbers = #tpu.dot_dimension_numbers<[1], [0], [0], [1], [0, 0, 1, 1], [], []>} : vector<8x8xf32>, vector<8x16xf32>, vector<8x16xf32> -> vector<8x16xf32>
    %cst_21 = arith.constant 2.000000e+00 : f32
    %25 = vector.broadcast %cst_21 : f32 to vector<8x16xf32>
    %26 = arith.mulf %25, %24 : vector<8x16xf32>
    %27 = vector.broadcast %23 : vector<8x1xf32> to vector<8x16xf32>
    %28 = arith.subf %27, %26 : vector<8x16xf32>
    %c0_22 = arith.constant 0 : index
    %c0_23 = arith.constant 0 : index
    %29 = vector.load %arg9[%c0_22, %c0_23] : memref<1x16xf32, #tpu.memory_space<vmem>>, vector<1x16xf32>
    %30 = vector.broadcast %29 : vector<1x16xf32> to vector<8x16xf32>
    %31 = arith.addf %28, %30 : vector<8x16xf32>
    %cst_24 = arith.constant dense<0x7F800000> : vector<8xf32>
    %32 = vector.multi_reduction <minimumf>, %31, %cst_24 [1] : vector<8x16xf32> to vector<8xf32>
    %33 = vector.shape_cast %32 : vector<8xf32> to vector<8x1xf32>
    %34 = tpu.iota {dimensions = array<i32: 1>} : vector<8x16xi32>
    %35 = vector.broadcast %33 : vector<8x1xf32> to vector<8x16xf32>
    %36 = arith.cmpf ole, %31, %35 : vector<8x16xf32>
    %c16_i32 = arith.constant 16 : i32
    %37 = vector.broadcast %c16_i32 : i32 to vector<8x16xi32>
    %38 = arith.select %36, %34, %37 : vector<8x16xi1>, vector<8x16xi32>
    %cst_25 = arith.constant dense<2147483647> : vector<8xi32>
    %39 = vector.multi_reduction <minsi>, %38, %cst_25 [1] : vector<8x16xi32> to vector<8xi32>
    %40 = vector.shape_cast %39 : vector<8xi32> to vector<8x1xi32>
    %41 = vector.broadcast %40 : vector<8x1xi32> to vector<8x16xi32>
    %42 = arith.cmpi eq, %34, %41 : vector<8x16xi32>
    %43 = arith.extui %42 : vector<8x16xi1> to vector<8x16xi32>
    %44 = arith.sitofp %43 : vector<8x16xi32> to vector<8x16xf32>
    %cst_26 = arith.constant dense<0.000000e+00> : vector<8x8xf32>
    %45 = tpu.matmul %44, %20, %cst_26 {dimension_numbers = #tpu.dot_dimension_numbers<[1], [1], [0], [0], [0, 0, 1, 0], [], []>} : vector<8x16xf32>, vector<8x16xf32>, vector<8x8xf32> -> vector<8x8xf32>
    %c0_27 = arith.constant 0 : index
    %c0_28 = arith.constant 0 : index
    %46 = vector.load %arg10[%c0_27, %c0_28] : memref<8x32xf32, #tpu.memory_space<vmem>>, vector<8x32xf32>
    %cst_29 = arith.constant dense<0.000000e+00> : vector<8x32xf32>
    %47 = tpu.matmul %45, %46, %cst_29 {dimension_numbers = #tpu.dot_dimension_numbers<[1], [0], [0], [1], [0, 0, 1, 1], [], []>} : vector<8x8xf32>, vector<8x32xf32>, vector<8x32xf32> -> vector<8x32xf32>
    %c0_30 = arith.constant 0 : index
    %c0_31 = arith.constant 0 : index
    %48 = vector.load %arg11[%c0_30, %c0_31] : memref<1x32xf32, #tpu.memory_space<vmem>>, vector<1x32xf32>
    %49 = vector.broadcast %48 : vector<1x32xf32> to vector<8x32xf32>
    %50 = arith.addf %47, %49 : vector<8x32xf32>
    %cst_32 = arith.constant 0.000000e+00 : f32
    %51 = vector.broadcast %cst_32 : f32 to vector<8x32xf32>
    %52 = arith.maximumf %50, %51 : vector<8x32xf32>
    %c0_33 = arith.constant 0 : index
    %c0_34 = arith.constant 0 : index
    %53 = vector.load %arg12[%c0_33, %c0_34] : memref<32x32xf32, #tpu.memory_space<vmem>>, vector<32x32xf32>
    %cst_35 = arith.constant dense<0.000000e+00> : vector<8x32xf32>
    %54 = tpu.matmul %52, %53, %cst_35 {dimension_numbers = #tpu.dot_dimension_numbers<[1], [0], [0], [1], [0, 0, 1, 1], [], []>} : vector<8x32xf32>, vector<32x32xf32>, vector<8x32xf32> -> vector<8x32xf32>
    %c0_36 = arith.constant 0 : index
    %c0_37 = arith.constant 0 : index
    %55 = vector.load %arg13[%c0_36, %c0_37] : memref<1x32xf32, #tpu.memory_space<vmem>>, vector<1x32xf32>
    %56 = vector.broadcast %55 : vector<1x32xf32> to vector<8x32xf32>
    %57 = arith.addf %54, %56 : vector<8x32xf32>
    %cst_38 = arith.constant 0.000000e+00 : f32
    %58 = vector.broadcast %cst_38 : f32 to vector<8x32xf32>
    %59 = arith.maximumf %57, %58 : vector<8x32xf32>
    %c0_39 = arith.constant 0 : index
    %c0_40 = arith.constant 0 : index
    %60 = vector.load %arg14[%c0_39, %c0_40] : memref<32x64xf32, #tpu.memory_space<vmem>>, vector<32x64xf32>
    %cst_41 = arith.constant dense<0.000000e+00> : vector<8x64xf32>
    %61 = tpu.matmul %59, %60, %cst_41 {dimension_numbers = #tpu.dot_dimension_numbers<[1], [0], [0], [1], [0, 0, 1, 1], [], []>} : vector<8x32xf32>, vector<32x64xf32>, vector<8x64xf32> -> vector<8x64xf32>
    %c0_42 = arith.constant 0 : index
    %c0_43 = arith.constant 0 : index
    %62 = vector.load %arg15[%c0_42, %c0_43] : memref<1x64xf32, #tpu.memory_space<vmem>>, vector<1x64xf32>
    %63 = vector.broadcast %62 : vector<1x64xf32> to vector<8x64xf32>
    %64 = arith.addf %61, %63 : vector<8x64xf32>
    %65 = arith.negf %64 : vector<8x64xf32>
    %66 = math.exp %65 : vector<8x64xf32>
    %cst_44 = arith.constant 1.000000e+00 : f32
    %67 = vector.broadcast %cst_44 : f32 to vector<8x64xf32>
    %68 = arith.addf %67, %66 : vector<8x64xf32>
    %69 = arith.divf %67, %68 : vector<8x64xf32>
    %cst_45 = arith.constant 0.000000e+00 : f32
    %70 = vector.broadcast %cst_45 : f32 to vector<8x48xf32>
    %71 = tpu.concatenate %69, %19, %45, %70 in 1 : vector<8x64xf32>, vector<8x8xf32>, vector<8x8xf32>, vector<8x48xf32> -> vector<8x128xf32>
    %c0_46 = arith.constant 0 : index
    %c0_47 = arith.constant 0 : index
    %72 = vector.load %arg16[%c0_46, %c0_47] : memref<8x128xf32, #tpu.memory_space<vmem>>, vector<8x128xf32>
    tpu.vector_store %arg16[%c0_46, %c0_47], %71 {strides = array<i32>} : memref<8x128xf32, #tpu.memory_space<vmem>>, vector<8x128xf32>,
    return
  }
  func.func @transform_0(%arg0: i32) -> (i32, i32) {
    %c0_i32 = arith.constant 0 : i32
    %c0_i32_0 = arith.constant 0 : i32
    return %arg0, %c0_i32 : i32, i32
  }
  func.func @transform_1(%arg0: i32) -> (i32, i32) {
    %c0_i32 = arith.constant 0 : i32
    %c0_i32_0 = arith.constant 0 : i32
    %c0_i32_1 = arith.constant 0 : i32
    return %c0_i32, %c0_i32_0 : i32, i32
  }
  func.func @transform_2(%arg0: i32) -> (i32, i32) {
    %c0_i32 = arith.constant 0 : i32
    %c0_i32_0 = arith.constant 0 : i32
    %c0_i32_1 = arith.constant 0 : i32
    return %c0_i32, %c0_i32_0 : i32, i32
  }
  func.func @transform_3(%arg0: i32) -> (i32, i32) {
    %c0_i32 = arith.constant 0 : i32
    %c0_i32_0 = arith.constant 0 : i32
    %c0_i32_1 = arith.constant 0 : i32
    return %c0_i32, %c0_i32_0 : i32, i32
  }
  func.func @transform_4(%arg0: i32) -> (i32, i32) {
    %c0_i32 = arith.constant 0 : i32
    %c0_i32_0 = arith.constant 0 : i32
    %c0_i32_1 = arith.constant 0 : i32
    return %c0_i32, %c0_i32_0 : i32, i32
  }
  func.func @transform_5(%arg0: i32) -> (i32, i32) {
    %c0_i32 = arith.constant 0 : i32
    %c0_i32_0 = arith.constant 0 : i32
    %c0_i32_1 = arith.constant 0 : i32
    return %c0_i32, %c0_i32_0 : i32, i32
  }
  func.func @transform_6(%arg0: i32) -> (i32, i32) {
    %c0_i32 = arith.constant 0 : i32
    %c0_i32_0 = arith.constant 0 : i32
    %c0_i32_1 = arith.constant 0 : i32
    return %c0_i32, %c0_i32_0 : i32, i32
  }
  func.func @transform_7(%arg0: i32) -> (i32, i32) {
    %c0_i32 = arith.constant 0 : i32
    %c0_i32_0 = arith.constant 0 : i32
    %c0_i32_1 = arith.constant 0 : i32
    return %c0_i32, %c0_i32_0 : i32, i32
  }
  func.func @transform_8(%arg0: i32) -> (i32, i32) {
    %c0_i32 = arith.constant 0 : i32
    %c0_i32_0 = arith.constant 0 : i32
    %c0_i32_1 = arith.constant 0 : i32
    return %c0_i32, %c0_i32_0 : i32, i32
  }
  func.func @transform_9(%arg0: i32) -> (i32, i32) {
    %c0_i32 = arith.constant 0 : i32
    %c0_i32_0 = arith.constant 0 : i32
    %c0_i32_1 = arith.constant 0 : i32
    return %c0_i32, %c0_i32_0 : i32, i32
  }
  func.func @transform_10(%arg0: i32) -> (i32, i32) {
    %c0_i32 = arith.constant 0 : i32
    %c0_i32_0 = arith.constant 0 : i32
    %c0_i32_1 = arith.constant 0 : i32
    return %c0_i32, %c0_i32_0 : i32, i32
  }
  func.func @transform_11(%arg0: i32) -> (i32, i32) {
    %c0_i32 = arith.constant 0 : i32
    %c0_i32_0 = arith.constant 0 : i32
    %c0_i32_1 = arith.constant 0 : i32
    return %c0_i32, %c0_i32_0 : i32, i32
  }
  func.func @transform_12(%arg0: i32) -> (i32, i32) {
    %c0_i32 = arith.constant 0 : i32
    %c0_i32_0 = arith.constant 0 : i32
    %c0_i32_1 = arith.constant 0 : i32
    return %c0_i32, %c0_i32_0 : i32, i32
  }
  func.func @transform_13(%arg0: i32) -> (i32, i32) {
    %c0_i32 = arith.constant 0 : i32
    %c0_i32_0 = arith.constant 0 : i32
    %c0_i32_1 = arith.constant 0 : i32
    return %c0_i32, %c0_i32_0 : i32, i32
  }
  func.func @transform_14(%arg0: i32) -> (i32, i32) {
    %c0_i32 = arith.constant 0 : i32
    %c0_i32_0 = arith.constant 0 : i32
    %c0_i32_1 = arith.constant 0 : i32
    return %c0_i32, %c0_i32_0 : i32, i32
  }
  func.func @transform_15(%arg0: i32) -> (i32, i32) {
    %c0_i32 = arith.constant 0 : i32
    %c0_i32_0 = arith.constant 0 : i32
    return %arg0, %c0_i32 : i32, i32
  }
}

</mosaic_0001>

<llo_original>
// kernel: tpu_custom_call.1
$region0: #{tpu_custom_call.1}
  #allocation0 [shape = 'u32[]', space=smem, size = 0x4, offset = 0x4, fixed_abs, tag = 'smem constant byte address 0x4 - core index']
  #allocation1 [shape = 'u32[144,128]{1,0:T(1,128)}', space=vmem, size = 0x12000, scoped, tag = 'internal scratch']
  %s0 = inlined_call_operand.vmem [shape: f32[8,64], index: 0, kind: input, shape index: {}]
  %s1 = inlined_call_operand.vmem [shape: f32[64,32], index: 1, kind: input, shape index: {}]
  %s2 = inlined_call_operand.vmem [shape: f32[1,32], index: 2, kind: input, shape index: {}]
  %s3 = inlined_call_operand.vmem [shape: f32[32,32], index: 3, kind: input, shape index: {}]
  %s4 = inlined_call_operand.vmem [shape: f32[1,32], index: 4, kind: input, shape index: {}]
  %s5 = inlined_call_operand.vmem [shape: f32[32,8], index: 5, kind: input, shape index: {}]
  %s6 = inlined_call_operand.hbm [shape: f32[1,8], index: 6, kind: input, shape index: {}]
  %s7 = inlined_call_operand.vmem [shape: f32[8,16], index: 7, kind: input, shape index: {}]
  %s8 = inlined_call_operand.vmem [shape: f32[1,16], index: 8, kind: input, shape index: {}]
  %s9 = inlined_call_operand.vmem [shape: f32[8,32], index: 9, kind: input, shape index: {}]
  %s10 = inlined_call_operand.vmem [shape: f32[1,32], index: 10, kind: input, shape index: {}]
  %s11 = inlined_call_operand.vmem [shape: f32[32,32], index: 11, kind: input, shape index: {}]
  %s12 = inlined_call_operand.vmem [shape: f32[1,32], index: 12, kind: input, shape index: {}]
  %s13 = inlined_call_operand.vmem [shape: f32[32,64], index: 13, kind: input, shape index: {}]
  %s14 = inlined_call_operand.vmem [shape: f32[1,64], index: 14, kind: input, shape index: {}]
  %s15 = inlined_call_operand.hbm [shape: f32[8,128], index: 15, kind: output, shape index: {}]
  %s16 = sld [smem:[#allocation0]]
  $region74: #{tpu_custom_call.1} parent=0
    _
  %s18 = ssub.s32 1, %s16
  %s19 = scalar_select 0, %s18, %s16
  $region1: #{tpu_custom_call.1} parent=0
    #allocation2 [shape = 'u8[512]{0}', space=vmem, size = 0x400, scoped, tag = 'input window, operand 6, single buffered']
    #allocation3 [shape = 's32[1]{0}', space=sflag, size = 0x4, scoped, tag = 'scoped memory for tpu_custom_call.1']
    #allocation4 [shape = 's32[1]{0}', space=sflag, size = 0x4, scoped, tag = 'scoped memory for tpu_custom_call.1']
    #allocation5 [shape = 'u8[4096]{0}', space=vmem, size = 0x1000, scoped, tag = 'output window, operand 0, single buffered']
    %20 = vsyncpa [#allocation3], 0
    %21 = vsyncpa [#allocation4], 0
    // Predicated region
    $region2: #{tpu_custom_call.1} parent=1 // pred_check
      _
    $region3: #{tpu_custom_call.1} parent=1 // pred_check_branch
      %23 = sbr.rel (0) target = $region5
    $region4: #{tpu_custom_call.1} parent=1 // pred_region
      _
    $region5: #{tpu_custom_call.1} parent=1 // pred_fallthru
      _
    // Predicated region
    $region6: #{tpu_custom_call.1} parent=1 // pred_check
      _
    $region7: #{tpu_custom_call.1} parent=1 // pred_check_branch
      %25 = sbr.rel (0) target = $region9
    $region8: #{tpu_custom_call.1} parent=1 // pred_region
      _
    $region9: #{tpu_custom_call.1} parent=1 // pred_fallthru
      _
    // Predicated region
    $region10: #{tpu_custom_call.1} parent=1 // pred_check
      _
    $region11: #{tpu_custom_call.1} parent=1 // pred_check_branch
      %27 = sbr.rel (0) target = $region13
    $region12: #{tpu_custom_call.1} parent=1 // pred_region
      _
    $region13: #{tpu_custom_call.1} parent=1 // pred_fallthru
      _
    // Predicated region
    $region14: #{tpu_custom_call.1} parent=1 // pred_check
      _
    $region15: #{tpu_custom_call.1} parent=1 // pred_check_branch
      %29 = sbr.rel (0) target = $region17
    $region16: #{tpu_custom_call.1} parent=1 // pred_region
      _
    $region17: #{tpu_custom_call.1} parent=1 // pred_fallthru
      _
    // Predicated region
    $region18: #{tpu_custom_call.1} parent=1 // pred_check
      _
    $region19: #{tpu_custom_call.1} parent=1 // pred_check_branch
      %31 = sbr.rel (0) target = $region21
    $region20: #{tpu_custom_call.1} parent=1 // pred_region
      _
    $region21: #{tpu_custom_call.1} parent=1 // pred_fallthru
      _
    // Predicated region
    $region22: #{tpu_custom_call.1} parent=1 // pred_check
      _
    $region23: #{tpu_custom_call.1} parent=1 // pred_check_branch
      %33 = sbr.rel (0) target = $region25
    $region24: #{tpu_custom_call.1} parent=1 // pred_region
      _
    $region25: #{tpu_custom_call.1} parent=1 // pred_fallthru
      _
    // Predicated region
    $region26: #{tpu_custom_call.1} parent=1 // pred_check
      _
    $region27: #{tpu_custom_call.1} parent=1 // pred_check_branch
      %35 = sbr.rel (0) target = $region29
    $region28: #{tpu_custom_call.1} parent=1 // pred_region
      %s37 = ssub.s32 16, 16
      %38 = vsyncadd [#allocation3], %s37
      %s40 = sshll.u32 [#allocation2], 4
      %s41 = int_to_ptr.vmem [resolvable:$true] %s40
      %43 = dma.hbm_to_vmem [thread:$0]  %s6, 16, %s41, [#allocation3]
    $region29: #{tpu_custom_call.1} parent=1 // pred_fallthru
      _
    // Predicated region
    $region30: #{tpu_custom_call.1} parent=1 // pred_check
      _
    $region31: #{tpu_custom_call.1} parent=1 // pred_check_branch
      %45 = sbr.rel (0) target = $region33
    $region32: #{tpu_custom_call.1} parent=1 // pred_region
      _
    $region33: #{tpu_custom_call.1} parent=1 // pred_fallthru
      _
    // Predicated region
    $region34: #{tpu_custom_call.1} parent=1 // pred_check
      _
    $region35: #{tpu_custom_call.1} parent=1 // pred_check_branch
      %47 = sbr.rel (0) target = $region37
    $region36: #{tpu_custom_call.1} parent=1 // pred_region
      _
    $region37: #{tpu_custom_call.1} parent=1 // pred_fallthru
      _
    // Predicated region
    $region38: #{tpu_custom_call.1} parent=1 // pred_check
      _
    $region39: #{tpu_custom_call.1} parent=1 // pred_check_branch
      %49 = sbr.rel (0) target = $region41
    $region40: #{tpu_custom_call.1} parent=1 // pred_region
      _
    $region41: #{tpu_custom_call.1} parent=1 // pred_fallthru
      _
    // Predicated region
    $region42: #{tpu_custom_call.1} parent=1 // pred_check
      _
    $region43: #{tpu_custom_call.1} parent=1 // pred_check_branch
      %51 = sbr.rel (0) target = $region45
    $region44: #{tpu_custom_call.1} parent=1 // pred_region
      _
    $region45: #{tpu_custom_call.1} parent=1 // pred_fallthru
      _
    // Predicated region
    $region46: #{tpu_custom_call.1} parent=1 // pred_check
      _
    $region47: #{tpu_custom_call.1} parent=1 // pred_check_branch
      %53 = sbr.rel (0) target = $region49
    $region48: #{tpu_custom_call.1} parent=1 // pred_region
      _
    $region49: #{tpu_custom_call.1} parent=1 // pred_fallthru
      _
    // Predicated region
    $region50: #{tpu_custom_call.1} parent=1 // pred_check
      _
    $region51: #{tpu_custom_call.1} parent=1 // pred_check_branch
      %55 = sbr.rel (0) target = $region53
    $region52: #{tpu_custom_call.1} parent=1 // pred_region
      _
    $region53: #{tpu_custom_call.1} parent=1 // pred_fallthru
      _
    // Predicated region
    $region54: #{tpu_custom_call.1} parent=1 // pred_check
      _
    $region55: #{tpu_custom_call.1} parent=1 // pred_check_branch
      %57 = sbr.rel (0) target = $region57
    $region56: #{tpu_custom_call.1} parent=1 // pred_region
      _
    $region57: #{tpu_custom_call.1} parent=1 // pred_fallthru
      _
    // Predicated region
    $region58: #{tpu_custom_call.1} parent=1 // pred_check
      _
    $region59: #{tpu_custom_call.1} parent=1 // pred_check_branch
      %59 = sbr.rel (0) target = $region61
    $region60: #{tpu_custom_call.1} parent=1 // pred_region
      _
    $region61: #{tpu_custom_call.1} parent=1 // pred_fallthru
      _
    // Predicated region
    $region62: #{tpu_custom_call.1} parent=1 // pred_check
      _
    $region63: #{tpu_custom_call.1} parent=1 // pred_check_branch
      %61 = sbr.rel (0) target = $region65
    $region64: #{tpu_custom_call.1} parent=1 // pred_region
      %62 = dma.done [#allocation3], 16
    $region65: #{tpu_custom_call.1} parent=1 // pred_fallthru
      _
    %v63 = vld [vmem:[%s0] sm:$0xff]
    %v64 = vld [vmem:[%s1] sm:$0xff]
    %v65 = vld [vmem:[%s1 + $0x8] sm:$0xff]
    %v66 = vld [vmem:[%s1 + $0x10] sm:$0xff]
    %v67 = vld [vmem:[%s1 + $0x18] sm:$0xff]
    %v68 = vld [vmem:[%s1 + $0x20] sm:$0xff]
    %v69 = vld [vmem:[%s1 + $0x28] sm:$0xff]
    %v70 = vld [vmem:[%s1 + $0x30] sm:$0xff]
    %v71 = vld [vmem:[%s1 + $0x38] sm:$0xff]
    %v72 = vld [vmem:[%s2] sm:$0x1]
    %v74 = vlaneseq
    %v75 = vshrl.u32 %v74, 7
    %v76 = vsub.s32 0, %v75
    %v77 = vrot.slane %v72, %v76
    %vm79 = vcmask 523264
    %v81 = vsel %vm79, %v63, 0
    %83 = vmatprep.subr.mxu0 0.0
    %84 = vmatpush1.msra.mxu0 %v64
    %85 = vmatprep.subr.mxu0 0.0
    %86 = vmatpush1.msra.mxu0 %v65
    %87 = vmatprep.subr.mxu0 0.0
    %88 = vmatpush1.msra.mxu0 %v66
    %89 = vmatprep.subr.mxu0 0.0
    %90 = vmatpush1.msra.mxu0 %v67
    %91 = vmatprep.subr.mxu0 0.0
    %92 = vmatpush1.msra.mxu0 %v68
    %93 = vmatprep.subr.mxu0 0.0
    %94 = vmatpush1.msra.mxu0 %v69
    %95 = vmatprep.subr.mxu0 0.0
    %96 = vmatpush1.msra.mxu0 %v70
    %97 = vmatprep.subr.mxu0 0.0
    %98 = vmatpush1.msra.mxu0 %v71
    %99 = vmatprep.subr.mxu0 0.0
    %100 = vmatpush1.msra.mxu0 0.0
    %101 = vmatprep.subr.mxu0 0.0
    %102 = vmatpush1.msra.mxu0 0.0
    %103 = vmatprep.subr.mxu0 0.0
    %104 = vmatpush1.msra.mxu0 0.0
    %105 = vmatprep.subr.mxu0 0.0
    %106 = vmatpush1.msra.mxu0 0.0
    %107 = vmatprep.subr.mxu0 0.0
    %108 = vmatpush1.msra.mxu0 0.0
    %109 = vmatprep.subr.mxu0 0.0
    %110 = vmatpush1.msra.mxu0 0.0
    %111 = vmatprep.subr.mxu0 0.0
    %112 = vmatpush1.msra.mxu0 0.0
    %113 = vmatprep.subr.mxu0 0.0
    %114 = vmatpush1.msra.mxu0 0.0
    %115 = vmatprep.subr.mxu0 0.0
    %116 = vmatpush1.msra.mxu0 0.0
    %117 = vmatprep.subr.mxu0 0.0
    %118 = vmatpush1.msra.mxu0 0.0
    %119 = vmatprep.subr.mxu0 0.0
    %120 = vmatpush1.msra.mxu0 0.0
    %121 = vmatprep.subr.mxu0 0.0
    %122 = vmatpush1.msra.mxu0 0.0
    %123 = vmatprep.subr.mxu0 0.0
    %124 = vmatpush1.msra.mxu0 0.0
    %125 = vmatprep.subr.mxu0 0.0
    %126 = vmatpush1.msra.mxu0 0.0
    %127 = vmatprep.subr.mxu0 0.0
    %128 = vmatpush1.msra.mxu0 0.0
    %129 = vmatprep.subr.mxu0 0.0
    %130 = vmatpush1.msra.mxu0 0.0
    %131 = vmatprep.subr.mxu0 0.0
    %132 = vmatpush1.msra.mxu0 0.0
    %133 = vmatprep.subr.mxu0 0.0
    %134 = vmatpush1.msra.mxu0 0.0
    %135 = vmatprep.subr.mxu0 0.0
    %136 = vmatpush1.msra.mxu0 0.0
    %137 = vmatprep.subr.mxu0 0.0
    %138 = vmatpush1.msra.mxu0 0.0
    %139 = vmatprep.subr.mxu0 0.0
    %140 = vmatpush1.msra.mxu0 0.0
    %141 = vmatprep.subr.mxu0 0.0
    %142 = vmatpush1.msra.mxu0 0.0
    %143 = vmatprep.subr.mxu0 0.0
    %144 = vmatpush1.msra.mxu0 0.0
    %145 = vmatprep.subr.mxu0 0.0
    %146 = vmatpush1.msra.mxu0 0.0
    %147 = vmatprep.mubr.f32.mxu0 0.0
    %148 = vmatmul.mubr.f32.gmra.mrb[0].mxu0 %v81
    %v149 = vpop.f32.mrb[0].mxu0
    %v150 = vadd.f32 %v77, %v149
    %v151 = vpop.f32.mrb[0].mxu0
    %152 = vdwg.mxu0
    %v153 = vmax.f32 %v150, 0.0
    %v154 = vld [vmem:[%s3] sm:$0xff]
    %v155 = vld [vmem:[%s3 + $0x8] sm:$0xff]
    %v156 = vld [vmem:[%s3 + $0x10] sm:$0xff]
    %v157 = vld [vmem:[%s3 + $0x18] sm:$0xff]
    %v158 = vld [vmem:[%s4] sm:$0x1]
    %v160 = vlaneseq
    %v161 = vshrl.u32 %v160, 7
    %v162 = vsub.s32 0, %v161
    %v163 = vrot.slane %v158, %v162
    %vm165 = vcmask 261120
    %v167 = vsel %vm165, %v153, 0
    %169 = vmatprep.subr.mxu0 0.0
    %170 = vmatpush1.msra.mxu0 %v154
    %171 = vmatprep.subr.mxu0 0.0
    %172 = vmatpush1.msra.mxu0 %v155
    %173 = vmatprep.subr.mxu0 0.0
    %174 = vmatpush1.msra.mxu0 %v156
    %175 = vmatprep.subr.mxu0 0.0
    %176 = vmatpush1.msra.mxu0 %v157
    %177 = vmatprep.subr.mxu0 0.0
    %178 = vmatpush1.msra.mxu0 0.0
    %179 = vmatprep.subr.mxu0 0.0
    %180 = vmatpush1.msra.mxu0 0.0
    %181 = vmatprep.subr.mxu0 0.0
    %182 = vmatpush1.msra.mxu0 0.0
    %183 = vmatprep.subr.mxu0 0.0
    %184 = vmatpush1.msra.mxu0 0.0
    %185 = vmatprep.subr.mxu0 0.0
    %186 = vmatpush1.msra.mxu0 0.0
    %187 = vmatprep.subr.mxu0 0.0
    %188 = vmatpush1.msra.mxu0 0.0
    %189 = vmatprep.subr.mxu0 0.0
    %190 = vmatpush1.msra.mxu0 0.0
    %191 = vmatprep.subr.mxu0 0.0
    %192 = vmatpush1.msra.mxu0 0.0
    %193 = vmatprep.subr.mxu0 0.0
    %194 = vmatpush1.msra.mxu0 0.0
    %195 = vmatprep.subr.mxu0 0.0
    %196 = vmatpush1.msra.mxu0 0.0
    %197 = vmatprep.subr.mxu0 0.0
    %198 = vmatpush1.msra.mxu0 0.0
    %199 = vmatprep.subr.mxu0 0.0
    %200 = vmatpush1.msra.mxu0 0.0
    %201 = vmatprep.subr.mxu0 0.0
    %202 = vmatpush1.msra.mxu0 0.0
    %203 = vmatprep.subr.mxu0 0.0
    %204 = vmatpush1.msra.mxu0 0.0
    %205 = vmatprep.subr.mxu0 0.0
    %206 = vmatpush1.msra.mxu0 0.0
    %207 = vmatprep.subr.mxu0 0.0
    %208 = vmatpush1.msra.mxu0 0.0
    %209 = vmatprep.subr.mxu0 0.0
    %210 = vmatpush1.msra.mxu0 0.0
    %211 = vmatprep.subr.mxu0 0.0
    %212 = vmatpush1.msra.mxu0 0.0
    %213 = vmatprep.subr.mxu0 0.0
    %214 = vmatpush1.msra.mxu0 0.0
    %215 = vmatprep.subr.mxu0 0.0
    %216 = vmatpush1.msra.mxu0 0.0
    %217 = vmatprep.subr.mxu0 0.0
    %218 = vmatpush1.msra.mxu0 0.0
    %219 = vmatprep.subr.mxu0 0.0
    %220 = vmatpush1.msra.mxu0 0.0
    %221 = vmatprep.subr.mxu0 0.0
    %222 = vmatpush1.msra.mxu0 0.0
    %223 = vmatprep.subr.mxu0 0.0
    %224 = vmatpush1.msra.mxu0 0.0
    %225 = vmatprep.subr.mxu0 0.0
    %226 = vmatpush1.msra.mxu0 0.0
    %227 = vmatprep.subr.mxu0 0.0
    %228 = vmatpush1.msra.mxu0 0.0
    %229 = vmatprep.subr.mxu0 0.0
    %230 = vmatpush1.msra.mxu0 0.0
    %231 = vmatprep.subr.mxu0 0.0
    %232 = vmatpush1.msra.mxu0 0.0
    %233 = vmatprep.mubr.f32.mxu0 0.0
    %234 = vmatmul.mubr.f32.gmra.mrb[0].mxu0 %v167
    %v235 = vpop.f32.mrb[0].mxu0
    %v236 = vadd.f32 %v163, %v235
    %v237 = vpop.f32.mrb[0].mxu0
    %238 = vdwg.mxu0
    %v239 = vmax.f32 %v236, 0.0
    %v240 = vld [vmem:[%s5] sm:$0xff]
    %v241 = vld [vmem:[%s5 + $0x8] sm:$0xff]
    %v242 = vld [vmem:[%s5 + $0x10] sm:$0xff]
    %v243 = vld [vmem:[%s5 + $0x18] sm:$0xff]
    %v244 = vld [vmem:[#allocation2] sm:$0x1]
    %v246 = vlaneseq
    %v247 = vshrl.u32 %v246, 7
    %v248 = vsub.s32 0, %v247
    %v249 = vrot.slane %v244, %v248
    %v252 = vsel %vm165, %v239, 0
    %254 = vmatprep.subr.mxu0 0.0
    %255 = vmatpush1.msra.mxu0 %v240
    %256 = vmatprep.subr.mxu0 0.0
    %257 = vmatpush1.msra.mxu0 %v241
    %258 = vmatprep.subr.mxu0 0.0
    %259 = vmatpush1.msra.mxu0 %v242
    %260 = vmatprep.subr.mxu0 0.0
    %261 = vmatpush1.msra.mxu0 %v243
    %262 = vmatprep.subr.mxu0 0.0
    %263 = vmatpush1.msra.mxu0 0.0
    %264 = vmatprep.subr.mxu0 0.0
    %265 = vmatpush1.msra.mxu0 0.0
    %266 = vmatprep.subr.mxu0 0.0
    %267 = vmatpush1.msra.mxu0 0.0
    %268 = vmatprep.subr.mxu0 0.0
    %269 = vmatpush1.msra.mxu0 0.0
    %270 = vmatprep.subr.mxu0 0.0
    %271 = vmatpush1.msra.mxu0 0.0
    %272 = vmatprep.subr.mxu0 0.0
    %273 = vmatpush1.msra.mxu0 0.0
    %274 = vmatprep.subr.mxu0 0.0
    %275 = vmatpush1.msra.mxu0 0.0
    %276 = vmatprep.subr.mxu0 0.0
    %277 = vmatpush1.msra.mxu0 0.0
    %278 = vmatprep.subr.mxu0 0.0
    %279 = vmatpush1.msra.mxu0 0.0
    %280 = vmatprep.subr.mxu0 0.0
    %281 = vmatpush1.msra.mxu0 0.0
    %282 = vmatprep.subr.mxu0 0.0
    %283 = vmatpush1.msra.mxu0 0.0
    %284 = vmatprep.subr.mxu0 0.0
    %285 = vmatpush1.msra.mxu0 0.0
    %286 = vmatprep.subr.mxu0 0.0
    %287 = vmatpush1.msra.mxu0 0.0
    %288 = vmatprep.subr.mxu0 0.0
    %289 = vmatpush1.msra.mxu0 0.0
    %290 = vmatprep.subr.mxu0 0.0
    %291 = vmatpush1.msra.mxu0 0.0
    %292 = vmatprep.subr.mxu0 0.0
    %293 = vmatpush1.msra.mxu0 0.0
    %294 = vmatprep.subr.mxu0 0.0
    %295 = vmatpush1.msra.mxu0 0.0
    %296 = vmatprep.subr.mxu0 0.0
    %297 = vmatpush1.msra.mxu0 0.0
    %298 = vmatprep.subr.mxu0 0.0
    %299 = vmatpush1.msra.mxu0 0.0
    %300 = vmatprep.subr.mxu0 0.0
    %301 = vmatpush1.msra.mxu0 0.0
    %302 = vmatprep.subr.mxu0 0.0
    %303 = vmatpush1.msra.mxu0 0.0
    %304 = vmatprep.subr.mxu0 0.0
    %305 = vmatpush1.msra.mxu0 0.0
    %306 = vmatprep.subr.mxu0 0.0
    %307 = vmatpush1.msra.mxu0 0.0
    %308 = vmatprep.subr.mxu0 0.0
    %309 = vmatpush1.msra.mxu0 0.0
    %310 = vmatprep.subr.mxu0 0.0
    %311 = vmatpush1.msra.mxu0 0.0
    %312 = vmatprep.subr.mxu0 0.0
    %313 = vmatpush1.msra.mxu0 0.0
    %314 = vmatprep.subr.mxu0 0.0
    %315 = vmatpush1.msra.mxu0 0.0
    %316 = vmatprep.subr.mxu0 0.0
    %317 = vmatpush1.msra.mxu0 0.0
    %318 = vmatprep.mubr.f32.mxu0 0.0
    %319 = vmatmul.mubr.f32.gmra.mrb[0].mxu0 %v252
    %v320 = vpop.f32.mrb[0].mxu0
    %v321 = vadd.f32 %v249, %v320
    %v322 = vpop.f32.mrb[0].mxu0
    %323 = vdwg.mxu0
    %v324 = vld [vmem:[%s7] sm:$0xff]
    %v325 = vmul.f32 %v321, %v321
    %vm326 = vcmask 64512
    %v327 = vsel %vm326, %v325, 0.0
    %328 = vadd.xlane.f32.xlu0 %v327
    %v329 = vpop.xlane.xlu0 %328
    %v331 = vsel %vm326, %v321, 0
    %333 = vmatprep.subr.mxu0 0.0
    %334 = vmatpush1.msra.mxu0 %v324
    %335 = vmatprep.subr.mxu0 0.0
    %336 = vmatpush1.msra.mxu0 0.0
    %337 = vmatprep.subr.mxu0 0.0
    %338 = vmatpush1.msra.mxu0 0.0
    %339 = vmatprep.subr.mxu0 0.0
    %340 = vmatpush1.msra.mxu0 0.0
    %341 = vmatprep.subr.mxu0 0.0
    %342 = vmatpush1.msra.mxu0 0.0
    %343 = vmatprep.subr.mxu0 0.0
    %344 = vmatpush1.msra.mxu0 0.0
    %345 = vmatprep.subr.mxu0 0.0
    %346 = vmatpush1.msra.mxu0 0.0
    %347 = vmatprep.subr.mxu0 0.0
    %348 = vmatpush1.msra.mxu0 0.0
    %349 = vmatprep.subr.mxu0 0.0
    %350 = vmatpush1.msra.mxu0 0.0
    %351 = vmatprep.subr.mxu0 0.0
    %352 = vmatpush1.msra.mxu0 0.0
    %353 = vmatprep.subr.mxu0 0.0
    %354 = vmatpush1.msra.mxu0 0.0
    %355 = vmatprep.subr.mxu0 0.0
    %356 = vmatpush1.msra.mxu0 0.0
    %357 = vmatprep.subr.mxu0 0.0
    %358 = vmatpush1.msra.mxu0 0.0
    %359 = vmatprep.subr.mxu0 0.0
    %360 = vmatpush1.msra.mxu0 0.0
    %361 = vmatprep.subr.mxu0 0.0
    %362 = vmatpush1.msra.mxu0 0.0
    %363 = vmatprep.subr.mxu0 0.0
    %364 = vmatpush1.msra.mxu0 0.0
    %365 = vmatprep.subr.mxu0 0.0
    %366 = vmatpush1.msra.mxu0 0.0
    %367 = vmatprep.subr.mxu0 0.0
    %368 = vmatpush1.msra.mxu0 0.0
    %369 = vmatprep.subr.mxu0 0.0
    %370 = vmatpush1.msra.mxu0 0.0
    %371 = vmatprep.subr.mxu0 0.0
    %372 = vmatpush1.msra.mxu0 0.0
    %373 = vmatprep.subr.mxu0 0.0
    %374 = vmatpush1.msra.mxu0 0.0
    %375 = vmatprep.subr.mxu0 0.0
    %376 = vmatpush1.msra.mxu0 0.0
    %377 = vmatprep.subr.mxu0 0.0
    %378 = vmatpush1.msra.mxu0 0.0
    %379 = vmatprep.subr.mxu0 0.0
    %380 = vmatpush1.msra.mxu0 0.0
    %381 = vmatprep.subr.mxu0 0.0
    %382 = vmatpush1.msra.mxu0 0.0
    %383 = vmatprep.subr.mxu0 0.0
    %384 = vmatpush1.msra.mxu0 0.0
    %385 = vmatprep.subr.mxu0 0.0
    %386 = vmatpush1.msra.mxu0 0.0
    %387 = vmatprep.subr.mxu0 0.0
    %388 = vmatpush1.msra.mxu0 0.0
    %389 = vmatprep.subr.mxu0 0.0
    %390 = vmatpush1.msra.mxu0 0.0
    %391 = vmatprep.subr.mxu0 0.0
    %392 = vmatpush1.msra.mxu0 0.0
    %393 = vmatprep.subr.mxu0 0.0
    %394 = vmatpush1.msra.mxu0 0.0
    %395 = vmatprep.subr.mxu0 0.0
    %396 = vmatpush1.msra.mxu0 0.0
    %397 = vmatprep.mubr.f32.mxu0 0.0
    %398 = vmatmul.mubr.f32.gmra.mrb[0].mxu0 %v331
    %v399 = vpop.f32.mrb[0].mxu0
    %v400 = vadd.f32 0.0, %v399
    %v401 = vpop.f32.mrb[0].mxu0
    %402 = vdwg.mxu0
    %v403 = vmul.f32 %v400, 2.0
    %v404 = vsub.f32 %v329, %v403
    %v405 = vld [vmem:[%s8] sm:$0x1]
    %v407 = vlaneseq
    %v408 = vshrl.u32 %v407, 7
    %v409 = vsub.s32 0, %v408
    %v410 = vrot.slane %v405, %v409
    %v412 = vadd.f32 %v404, %v410
    %vm413 = vcmask 130048
    %v414 = vsel %vm413, %v412, inf
    %415 = vmin.xlane.f32.xlu0 %v414
    %v416 = vpop.xlane.xlu0 %415
    %v417 = vlaneseq
    %v418 = vand.u32 %v417, 127
    %vm419 = vcmp.le.f32.partialorder %v412, %v416
    %v420 = vsel %vm419, %v418, 16
    %v421 = vsel %vm413, %v420, 2147483647
    %v422 = vand.u32 %v421, 65535
    %v423 = vshra.s32 %v421, 16
    %v424 = vcvt.s32.f32 %v422
    %v425 = vcvt.s32.f32 %v423
    %426 = vmin.xlane.f32.xlu0 %v425
    %v427 = vpop.xlane.xlu0 %426
    %vm428 = vcmp.eq.f32.partialorder %v425, %v427
    %v429 = vsel %vm428, %v424, inf
    %430 = vmin.xlane.f32.xlu0 %v429
    %v431 = vpop.xlane.xlu0 %430
    %v432 = vcvt.f32.s32 %v431
    %v433 = vcvt.f32.s32 %v427
    %v434 = vshll.u32 %v433, 16
    %v435 = vadd.s32 %v434, %v432
    %vm436 = vcmp.eq.s32.totalorder %v418, %v435
    %v437 = vsel %vm436, 1, 0
    %v438 = vcvt.s32.f32 %v437
    %v440 = vsel %vm413, %v438, 0
    %v443 = vsel %vm413, %v324, 0
    %445 = vmatprep.subr.mxu0 0.0
    %446 = vmatpush1.xpose.msra.mxu0 %v443
    %447 = vmatprep.subr.mxu0 0.0
    %448 = vmatpush1.xpose.msra.mxu0 0.0
    %449 = vmatprep.subr.mxu0 0.0
    %450 = vmatpush1.xpose.msra.mxu0 0.0
    %451 = vmatprep.subr.mxu0 0.0
    %452 = vmatpush1.xpose.msra.mxu0 0.0
    %453 = vmatprep.subr.mxu0 0.0
    %454 = vmatpush1.xpose.msra.mxu0 0.0
    %455 = vmatprep.subr.mxu0 0.0
    %456 = vmatpush1.xpose.msra.mxu0 0.0
    %457 = vmatprep.subr.mxu0 0.0
    %458 = vmatpush1.xpose.msra.mxu0 0.0
    %459 = vmatprep.subr.mxu0 0.0
    %460 = vmatpush1.xpose.msra.mxu0 0.0
    %461 = vmatprep.subr.mxu0 0.0
    %462 = vmatpush1.xpose.msra.mxu0 0.0
    %463 = vmatprep.subr.mxu0 0.0
    %464 = vmatpush1.xpose.msra.mxu0 0.0
    %465 = vmatprep.subr.mxu0 0.0
    %466 = vmatpush1.xpose.msra.mxu0 0.0
    %467 = vmatprep.subr.mxu0 0.0
    %468 = vmatpush1.xpose.msra.mxu0 0.0
    %469 = vmatprep.subr.mxu0 0.0
    %470 = vmatpush1.xpose.msra.mxu0 0.0
    %471 = vmatprep.subr.mxu0 0.0
    %472 = vmatpush1.xpose.msra.mxu0 0.0
    %473 = vmatprep.subr.mxu0 0.0
    %474 = vmatpush1.xpose.msra.mxu0 0.0
    %475 = vmatprep.subr.mxu0 0.0
    %476 = vmatpush1.xpose.msra.mxu0 0.0
    %477 = vmatprep.subr.mxu0 0.0
    %478 = vmatpush1.xpose.msra.mxu0 0.0
    %479 = vmatprep.subr.mxu0 0.0
    %480 = vmatpush1.xpose.msra.mxu0 0.0
    %481 = vmatprep.subr.mxu0 0.0
    %482 = vmatpush1.xpose.msra.mxu0 0.0
    %483 = vmatprep.subr.mxu0 0.0
    %484 = vmatpush1.xpose.msra.mxu0 0.0
    %485 = vmatprep.subr.mxu0 0.0
    %486 = vmatpush1.xpose.msra.mxu0 0.0
    %487 = vmatprep.subr.mxu0 0.0
    %488 = vmatpush1.xpose.msra.mxu0 0.0
    %489 = vmatprep.subr.mxu0 0.0
    %490 = vmatpush1.xpose.msra.mxu0 0.0
    %491 = vmatprep.subr.mxu0 0.0
    %492 = vmatpush1.xpose.msra.mxu0 0.0
    %493 = vmatprep.subr.mxu0 0.0
    %494 = vmatpush1.xpose.msra.mxu0 0.0
    %495 = vmatprep.subr.mxu0 0.0
    %496 = vmatpush1.xpose.msra.mxu0 0.0
    %497 = vmatprep.subr.mxu0 0.0
    %498 = vmatpush1.xpose.msra.mxu0 0.0
    %499 = vmatprep.subr.mxu0 0.0
    %500 = vmatpush1.xpose.msra.mxu0 0.0
    %501 = vmatprep.subr.mxu0 0.0
    %502 = vmatpush1.xpose.msra.mxu0 0.0
    %503 = vmatprep.subr.mxu0 0.0
    %504 = vmatpush1.xpose.msra.mxu0 0.0
    %505 = vmatprep.subr.mxu0 0.0
    %506 = vmatpush1.xpose.msra.mxu0 0.0
    %507 = vmatprep.subr.mxu0 0.0
    %508 = vmatpush1.xpose.msra.mxu0 0.0
    %509 = vmatprep.mubr.f32.mxu0 0.0
    %510 = vmatmul.mubr.f32.gmra.mrb[0].mxu0 %v440
    %v511 = vpop.f32.mrb[0].mxu0
    %v512 = vadd.f32 0.0, %v511
    %v513 = vpop.f32.mrb[0].mxu0
    %514 = vdwg.mxu0
    %v515 = vld [vmem:[%s9] sm:$0xff]
    %v516 = vld [vmem:[%s10] sm:$0x1]
    %v518 = vlaneseq
    %v519 = vshrl.u32 %v518, 7
    %v520 = vsub.s32 0, %v519
    %v521 = vrot.slane %v516, %v520
    %v524 = vsel %vm326, %v512, 0
    %526 = vmatprep.subr.mxu0 0.0
    %527 = vmatpush1.msra.mxu0 %v515
    %528 = vmatprep.subr.mxu0 0.0
    %529 = vmatpush1.msra.mxu0 0.0
    %530 = vmatprep.subr.mxu0 0.0
    %531 = vmatpush1.msra.mxu0 0.0
    %532 = vmatprep.subr.mxu0 0.0
    %533 = vmatpush1.msra.mxu0 0.0
    %534 = vmatprep.subr.mxu0 0.0
    %535 = vmatpush1.msra.mxu0 0.0
    %536 = vmatprep.subr.mxu0 0.0
    %537 = vmatpush1.msra.mxu0 0.0
    %538 = vmatprep.subr.mxu0 0.0
    %539 = vmatpush1.msra.mxu0 0.0
    %540 = vmatprep.subr.mxu0 0.0
    %541 = vmatpush1.msra.mxu0 0.0
    %542 = vmatprep.subr.mxu0 0.0
    %543 = vmatpush1.msra.mxu0 0.0
    %544 = vmatprep.subr.mxu0 0.0
    %545 = vmatpush1.msra.mxu0 0.0
    %546 = vmatprep.subr.mxu0 0.0
    %547 = vmatpush1.msra.mxu0 0.0
    %548 = vmatprep.subr.mxu0 0.0
    %549 = vmatpush1.msra.mxu0 0.0
    %550 = vmatprep.subr.mxu0 0.0
    %551 = vmatpush1.msra.mxu0 0.0
    %552 = vmatprep.subr.mxu0 0.0
    %553 = vmatpush1.msra.mxu0 0.0
    %554 = vmatprep.subr.mxu0 0.0
    %555 = vmatpush1.msra.mxu0 0.0
    %556 = vmatprep.subr.mxu0 0.0
    %557 = vmatpush1.msra.mxu0 0.0
    %558 = vmatprep.subr.mxu0 0.0
    %559 = vmatpush1.msra.mxu0 0.0
    %560 = vmatprep.subr.mxu0 0.0
    %561 = vmatpush1.msra.mxu0 0.0
    %562 = vmatprep.subr.mxu0 0.0
    %563 = vmatpush1.msra.mxu0 0.0
    %564 = vmatprep.subr.mxu0 0.0
    %565 = vmatpush1.msra.mxu0 0.0
    %566 = vmatprep.subr.mxu0 0.0
    %567 = vmatpush1.msra.mxu0 0.0
    %568 = vmatprep.subr.mxu0 0.0
    %569 = vmatpush1.msra.mxu0 0.0
    %570 = vmatprep.subr.mxu0 0.0
    %571 = vmatpush1.msra.mxu0 0.0
    %572 = vmatprep.subr.mxu0 0.0
    %573 = vmatpush1.msra.mxu0 0.0
    %574 = vmatprep.subr.mxu0 0.0
    %575 = vmatpush1.msra.mxu0 0.0
    %576 = vmatprep.subr.mxu0 0.0
    %577 = vmatpush1.msra.mxu0 0.0
    %578 = vmatprep.subr.mxu0 0.0
    %579 = vmatpush1.msra.mxu0 0.0
    %580 = vmatprep.subr.mxu0 0.0
    %581 = vmatpush1.msra.mxu0 0.0
    %582 = vmatprep.subr.mxu0 0.0
    %583 = vmatpush1.msra.mxu0 0.0
    %584 = vmatprep.subr.mxu0 0.0
    %585 = vmatpush1.msra.mxu0 0.0
    %586 = vmatprep.subr.mxu0 0.0
    %587 = vmatpush1.msra.mxu0 0.0
    %588 = vmatprep.subr.mxu0 0.0
    %589 = vmatpush1.msra.mxu0 0.0
    %590 = vmatprep.mubr.f32.mxu0 0.0
    %591 = vmatmul.mubr.f32.gmra.mrb[0].mxu0 %v524
    %v592 = vpop.f32.mrb[0].mxu0
    %v593 = vadd.f32 %v521, %v592
    %v594 = vpop.f32.mrb[0].mxu0
    %595 = vdwg.mxu0
    %v596 = vmax.f32 %v593, 0.0
    %v597 = vld [vmem:[%s11] sm:$0xff]
    %v598 = vld [vmem:[%s11 + $0x8] sm:$0xff]
    %v599 = vld [vmem:[%s11 + $0x10] sm:$0xff]
    %v600 = vld [vmem:[%s11 + $0x18] sm:$0xff]
    %v601 = vld [vmem:[%s12] sm:$0x1]
    %v603 = vlaneseq
    %v604 = vshrl.u32 %v603, 7
    %v605 = vsub.s32 0, %v604
    %v606 = vrot.slane %v601, %v605
    %v609 = vsel %vm165, %v596, 0
    %611 = vmatprep.subr.mxu0 0.0
    %612 = vmatpush1.msra.mxu0 %v597
    %613 = vmatprep.subr.mxu0 0.0
    %614 = vmatpush1.msra.mxu0 %v598
    %615 = vmatprep.subr.mxu0 0.0
    %616 = vmatpush1.msra.mxu0 %v599
    %617 = vmatprep.subr.mxu0 0.0
    %618 = vmatpush1.msra.mxu0 %v600
    %619 = vmatprep.subr.mxu0 0.0
    %620 = vmatpush1.msra.mxu0 0.0
    %621 = vmatprep.subr.mxu0 0.0
    %622 = vmatpush1.msra.mxu0 0.0
    %623 = vmatprep.subr.mxu0 0.0
    %624 = vmatpush1.msra.mxu0 0.0
    %625 = vmatprep.subr.mxu0 0.0
    %626 = vmatpush1.msra.mxu0 0.0
    %627 = vmatprep.subr.mxu0 0.0
    %628 = vmatpush1.msra.mxu0 0.0
    %629 = vmatprep.subr.mxu0 0.0
    %630 = vmatpush1.msra.mxu0 0.0
    %631 = vmatprep.subr.mxu0 0.0
    %632 = vmatpush1.msra.mxu0 0.0
    %633 = vmatprep.subr.mxu0 0.0
    %634 = vmatpush1.msra.mxu0 0.0
    %635 = vmatprep.subr.mxu0 0.0
    %636 = vmatpush1.msra.mxu0 0.0
    %637 = vmatprep.subr.mxu0 0.0
    %638 = vmatpush1.msra.mxu0 0.0
    %639 = vmatprep.subr.mxu0 0.0
    %640 = vmatpush1.msra.mxu0 0.0
    %641 = vmatprep.subr.mxu0 0.0
    %642 = vmatpush1.msra.mxu0 0.0
    %643 = vmatprep.subr.mxu0 0.0
    %644 = vmatpush1.msra.mxu0 0.0
    %645 = vmatprep.subr.mxu0 0.0
    %646 = vmatpush1.msra.mxu0 0.0
    %647 = vmatprep.subr.mxu0 0.0
    %648 = vmatpush1.msra.mxu0 0.0
    %649 = vmatprep.subr.mxu0 0.0
    %650 = vmatpush1.msra.mxu0 0.0
    %651 = vmatprep.subr.mxu0 0.0
    %652 = vmatpush1.msra.mxu0 0.0
    %653 = vmatprep.subr.mxu0 0.0
    %654 = vmatpush1.msra.mxu0 0.0
    %655 = vmatprep.subr.mxu0 0.0
    %656 = vmatpush1.msra.mxu0 0.0
    %657 = vmatprep.subr.mxu0 0.0
    %658 = vmatpush1.msra.mxu0 0.0
    %659 = vmatprep.subr.mxu0 0.0
    %660 = vmatpush1.msra.mxu0 0.0
    %661 = vmatprep.subr.mxu0 0.0
    %662 = vmatpush1.msra.mxu0 0.0
    %663 = vmatprep.subr.mxu0 0.0
    %664 = vmatpush1.msra.mxu0 0.0
    %665 = vmatprep.subr.mxu0 0.0
    %666 = vmatpush1.msra.mxu0 0.0
    %667 = vmatprep.subr.mxu0 0.0
    %668 = vmatpush1.msra.mxu0 0.0
    %669 = vmatprep.subr.mxu0 0.0
    %670 = vmatpush1.msra.mxu0 0.0
    %671 = vmatprep.subr.mxu0 0.0
    %672 = vmatpush1.msra.mxu0 0.0
    %673 = vmatprep.subr.mxu0 0.0
    %674 = vmatpush1.msra.mxu0 0.0
    %675 = vmatprep.mubr.f32.mxu0 0.0
    %676 = vmatmul.mubr.f32.gmra.mrb[0].mxu0 %v609
    %v677 = vpop.f32.mrb[0].mxu0
    %v678 = vadd.f32 %v606, %v677
    %v679 = vpop.f32.mrb[0].mxu0
    %680 = vdwg.mxu0
    %v681 = vmax.f32 %v678, 0.0
    %v682 = vld [vmem:[%s13] sm:$0xff]
    %v683 = vld [vmem:[%s13 + $0x8] sm:$0xff]
    %v684 = vld [vmem:[%s13 + $0x10] sm:$0xff]
    %v685 = vld [vmem:[%s13 + $0x18] sm:$0xff]
    %v686 = vld [vmem:[%s14] sm:$0x1]
    %v688 = vlaneseq
    %v689 = vshrl.u32 %v688, 7
    %v690 = vsub.s32 0, %v689
    %v691 = vrot.slane %v686, %v690
    %v694 = vsel %vm165, %v681, 0
    %696 = vmatprep.subr.mxu0 0.0
    %697 = vmatpush1.msra.mxu0 %v682
    %698 = vmatprep.subr.mxu0 0.0
    %699 = vmatpush1.msra.mxu0 %v683
    %700 = vmatprep.subr.mxu0 0.0
    %701 = vmatpush1.msra.mxu0 %v684
    %702 = vmatprep.subr.mxu0 0.0
    %703 = vmatpush1.msra.mxu0 %v685
    %704 = vmatprep.subr.mxu0 0.0
    %705 = vmatpush1.msra.mxu0 0.0
    %706 = vmatprep.subr.mxu0 0.0
    %707 = vmatpush1.msra.mxu0 0.0
    %708 = vmatprep.subr.mxu0 0.0
    %709 = vmatpush1.msra.mxu0 0.0
    %710 = vmatprep.subr.mxu0 0.0
    %711 = vmatpush1.msra.mxu0 0.0
    %712 = vmatprep.subr.mxu0 0.0
    %713 = vmatpush1.msra.mxu0 0.0
    %714 = vmatprep.subr.mxu0 0.0
    %715 = vmatpush1.msra.mxu0 0.0
    %716 = vmatprep.subr.mxu0 0.0
    %717 = vmatpush1.msra.mxu0 0.0
    %718 = vmatprep.subr.mxu0 0.0
    %719 = vmatpush1.msra.mxu0 0.0
    %720 = vmatprep.subr.mxu0 0.0
    %721 = vmatpush1.msra.mxu0 0.0
    %722 = vmatprep.subr.mxu0 0.0
    %723 = vmatpush1.msra.mxu0 0.0
    %724 = vmatprep.subr.mxu0 0.0
    %725 = vmatpush1.msra.mxu0 0.0
    %726 = vmatprep.subr.mxu0 0.0
    %727 = vmatpush1.msra.mxu0 0.0
    %728 = vmatprep.subr.mxu0 0.0
    %729 = vmatpush1.msra.mxu0 0.0
    %730 = vmatprep.subr.mxu0 0.0
    %731 = vmatpush1.msra.mxu0 0.0
    %732 = vmatprep.subr.mxu0 0.0
    %733 = vmatpush1.msra.mxu0 0.0
    %734 = vmatprep.subr.mxu0 0.0
    %735 = vmatpush1.msra.mxu0 0.0
    %736 = vmatprep.subr.mxu0 0.0
    %737 = vmatpush1.msra.mxu0 0.0
    %738 = vmatprep.subr.mxu0 0.0
    %739 = vmatpush1.msra.mxu0 0.0
    %740 = vmatprep.subr.mxu0 0.0
    %741 = vmatpush1.msra.mxu0 0.0
    %742 = vmatprep.subr.mxu0 0.0
    %743 = vmatpush1.msra.mxu0 0.0
    %744 = vmatprep.subr.mxu0 0.0
    %745 = vmatpush1.msra.mxu0 0.0
    %746 = vmatprep.subr.mxu0 0.0
    %747 = vmatpush1.msra.mxu0 0.0
    %748 = vmatprep.subr.mxu0 0.0
    %749 = vmatpush1.msra.mxu0 0.0
    %750 = vmatprep.subr.mxu0 0.0
    %751 = vmatpush1.msra.mxu0 0.0
    %752 = vmatprep.subr.mxu0 0.0
    %753 = vmatpush1.msra.mxu0 0.0
    %754 = vmatprep.subr.mxu0 0.0
    %755 = vmatpush1.msra.mxu0 0.0
    %756 = vmatprep.subr.mxu0 0.0
    %757 = vmatpush1.msra.mxu0 0.0
    %758 = vmatprep.subr.mxu0 0.0
    %759 = vmatpush1.msra.mxu0 0.0
    %760 = vmatprep.mubr.f32.mxu0 0.0
    %761 = vmatmul.mubr.f32.gmra.mrb[0].mxu0 %v694
    %v762 = vpop.f32.mrb[0].mxu0
    %v763 = vadd.f32 %v691, %v762
    %v764 = vpop.f32.mrb[0].mxu0
    %765 = vdwg.mxu0
    %v766 = vxor.u32 %v763, 2147483648
    %v767 = vmul.f32 %v766, 1.442695
    %v768 = vpow.pop %v767
    %v769 = vadd.f32 %v768, 1.0
    %v770 = vrcp.pop %v769
    %v771 = vmul.f32 1.0, %v770
    %772 = vrot.lane.b32.xlu0 %v321, 64
    %v773 = vpop.permute.xlu0 %772
    %775 = vrot.lane.b32.xlu0 %v512, 72
    %v776 = vpop.permute.xlu0 %775
    %v778 = vsel %vm79, %v771, %v773
    %vm779 = vcmask 588800
    %v780 = vsel %vm779, %v778, %v776
    %vm781 = vcmask 654336
    %v782 = vsel %vm781, %v780, 0.0
    %783 = vst [vmem:[#allocation5] sm:$0xff] %v782
    // Predicated region
    $region66: #{tpu_custom_call.1} parent=1 // pred_check
      _
    $region67: #{tpu_custom_call.1} parent=1 // pred_check_branch
      %785 = sbr.rel (0) target = $region69
    $region68: #{tpu_custom_call.1} parent=1 // pred_region
      %s787 = ssub.s32 128, 128
      %788 = vsyncadd [#allocation4], %s787
      %s790 = sshll.u32 [#allocation5], 4
      %s791 = int_to_ptr.vmem [resolvable:$true] %s790
      %793 = dma.vmem_to_hbm [thread:$0]  %s791, 128, %s15, [#allocation4]
    $region69: #{tpu_custom_call.1} parent=1 // pred_fallthru
      _
    // Predicated region
    $region70: #{tpu_custom_call.1} parent=1 // pred_check
      _
    $region71: #{tpu_custom_call.1} parent=1 // pred_check_branch
      %795 = sbr.rel (0) target = $region73
    $region72: #{tpu_custom_call.1} parent=1 // pred_region
      %796 = dma.done [#allocation4], 128
    $region73: #{tpu_custom_call.1} parent=1 // pred_fallthru
      _
    %797 = vsyncpa [#allocation3], 1
    %798 = vsyncpa [#allocation4], 1

</llo_original>
